<compile_context>
chip_gen: v7x
topology: tpu7x:2x2x1
jax: 0.10.0
libtpu: 0.0.40
codegen_flags: <defaults>
</compile_context>

<pallas_src>
import functools

import jax
import jax.numpy as jnp
from jax.experimental import pallas as pl
from jax.experimental.pallas import tpu as pltpu


# 48 MiB: generous on v5e/v6e (128 MiB physical VMEM), leaves headroom under
# v7x's 64 MiB physical VMEM. Actual footprint at 512^3 f32 tiles is ~7 MiB.
_VMEM_LIMIT_BYTES = 48 * 1024 * 1024

# Preferred tile sizes (largest first). All are multiples of 256 or 128, so
# MXU occupancy is good on the 256x256 MXUs (v6e/v7x) and the (8,128) layout
# constraint is always satisfied.
_TILE_CANDIDATES = (512, 256, 128)


def _pick_tile(dim, candidates=_TILE_CANDIDATES):
    """Largest candidate that divides `dim`; else largest candidate <= dim
    (caller pads); else the full (small) dim."""
    for c in candidates:
        if dim % c == 0:
            return c
    for c in candidates:
        if dim >= c:
            return c
    return dim  # dim < 128: full-extent block (always legal, no padding)


def _pad2d(a, rows, cols):
    r, c = a.shape
    if r == rows and c == cols:
        return a
    return jnp.pad(a, ((0, rows - r), (0, cols - c)))


def _matmul_kernel_inplace(x_ref, y_ref, o_ref):
    """f32 output: accumulate directly into the resident output block."""
    @pl.when(pl.program_id(2) == 0)
    def _():
        o_ref[...] = jnp.zeros_like(o_ref)

    o_ref[...] += jnp.dot(
        x_ref[...], y_ref[...], preferred_element_type=jnp.float32
    )


def _matmul_kernel_acc(x_ref, y_ref, o_ref, acc_ref):
    """Narrow output dtype: accumulate in f32 scratch, cast on last k step."""
    @pl.when(pl.program_id(2) == 0)
    def _():
        acc_ref[...] = jnp.zeros_like(acc_ref)

    acc_ref[...] += jnp.dot(
        x_ref[...], y_ref[...], preferred_element_type=jnp.float32
    )

    @pl.when(pl.program_id(2) == pl.num_programs(2) - 1)
    def _():
        o_ref[...] = acc_ref[...].astype(o_ref.dtype)


@functools.partial(jax.jit, static_argnames=("tm", "tn", "tk"))
def matmul(x, y, *, tm=None, tn=None, tk=None):
    """Pallas equivalent of torch.mm(x, y)."""
    M, K = x.shape
    K2, N = y.shape
    assert K == K2, f"inner dims must match, got {K} vs {K2}"

    out_dtype = jnp.result_type(x.dtype, y.dtype)

    tm = tm or _pick_tile(M)
    tn = tn or _pick_tile(N)
    tk = tk or _pick_tile(K)

    # Pad every dimension up to a tile multiple (zeros are exact for matmul);
    # this makes any (tm, tn, tk) choice correct, never silently truncating.
    Mp = pl.cdiv(M, tm) * tm
    Np = pl.cdiv(N, tn) * tn
    Kp = pl.cdiv(K, tk) * tk
    xp = _pad2d(x, Mp, Kp)
    yp = _pad2d(y, Kp, Np)

    grid = (Mp // tm, Np // tn, Kp // tk)

    # f32 output: accumulate in the resident output block (saves tm*tn*4 bytes
    # of VMEM and the final tile copy). Otherwise keep an f32 scratch.
    if out_dtype == jnp.float32:
        kernel = _matmul_kernel_inplace
        scratch_shapes = []
    else:
        kernel = _matmul_kernel_acc
        scratch_shapes = [pltpu.VMEM((tm, tn), jnp.float32)]

    in_itemsize = jnp.dtype(x.dtype).itemsize
    cost = pl.CostEstimate(
        flops=2 * M * N * K,
        transcendentals=0,
        bytes_accessed=in_itemsize * (M * K + K * N)
        + jnp.dtype(out_dtype).itemsize * M * N,
    )

    out = pl.pallas_call(
        kernel,
        out_shape=jax.ShapeDtypeStruct((Mp, Np), out_dtype),
        grid_spec=pltpu.PrefetchScalarGridSpec(
            num_scalar_prefetch=0,
            grid=grid,
            in_specs=[
                pl.BlockSpec((tm, tk), lambda i, j, k: (i, k)),
                pl.BlockSpec((tk, tn), lambda i, j, k: (k, j)),
            ],
            out_specs=pl.BlockSpec((tm, tn), lambda i, j, k: (i, j)),
            scratch_shapes=scratch_shapes,
        ),
        compiler_params=pltpu.CompilerParams(
            dimension_semantics=("parallel", "parallel", "arbitrary"),
            vmem_limit_bytes=_VMEM_LIMIT_BYTES,
        ),
        cost_estimate=cost,
    )(xp, yp)

    if (Mp, Np) != (M, N):
        out = out[:M, :N]
    return out


if __name__ == "__main__":
    key = jax.random.PRNGKey(0)

    # Case 1: small shapes consistent with torch.mm: x (M, K), y (K, N).
    M, K, N = 8, 32, 16
    kx, ky, key = jax.random.split(key, 3)
    x = jax.random.normal(kx, (M, K), dtype=jnp.float32)
    y = jax.random.normal(ky, (K, N), dtype=jnp.float32)
    out = jax.block_until_ready(matmul(x, y))
    ref = jnp.dot(x, y, preferred_element_type=jnp.float32)
    assert out.shape == (M, N)
    assert jnp.allclose(out, ref, atol=1e-5, rtol=1e-5), "mismatch (small case)"

    # Case 2: exercises the tiled path (divisible dims, multi-step grid).
    M2, K2, N2 = 256, 384, 512
    kx, ky, key = jax.random.split(key, 3)
    x2 = jax.random.normal(kx, (M2, K2), dtype=jnp.float32)
    y2 = jax.random.normal(ky, (K2, N2), dtype=jnp.float32)
    out2 = jax.block_until_ready(matmul(x2, y2))
    ref2 = jnp.dot(x2, y2, preferred_element_type=jnp.float32)
    assert out2.shape == (M2, N2)
    assert jnp.allclose(out2, ref2, atol=1e-3, rtol=1e-4), "mismatch (tiled case)"

    # Case 3: exercises the padding path (non-divisible dims).
    M3, K3, N3 = 130, 96, 200
    kx, ky = jax.random.split(key)
    x3 = jax.random.normal(kx, (M3, K3), dtype=jnp.float32)
    y3 = jax.random.normal(ky, (K3, N3), dtype=jnp.float32)
    out3 = jax.block_until_ready(matmul(x3, y3))
    ref3 = jnp.dot(x3, y3, preferred_element_type=jnp.float32)
    assert out3.shape == (M3, N3)
    assert jnp.allclose(out3, ref3, atol=1e-4, rtol=1e-4), "mismatch (padded case)"

    print("KERNEL_OK")
</pallas_src>

<mosaic_0001>
module attributes {stable_mosaic.version = 11 : i64} {
  func.func @_matmul_kernel_inplace(%arg0: i32, %arg1: i32, %arg2: i32, %arg3: memref<8x32xf32, #tpu.memory_space<vmem>>, %arg4: memref<32x16xf32, #tpu.memory_space<vmem>>, %arg5: memref<8x16xf32, #tpu.memory_space<vmem>>) attributes {dimension_semantics = [#tpu.dimension_semantics<parallel>, #tpu.dimension_semantics<parallel>, #tpu.dimension_semantics<arbitrary>], iteration_bounds = array<i64: 1, 1, 1>, scalar_prefetch = 0 : i64, scratch_operands = 0 : i64, tpu.core_type = #tpu.core_type<tc>, window_params = [{transform_indices = @transform_0, window_bounds = array<i64: 8, 32>}, {transform_indices = @transform_1, window_bounds = array<i64: 32, 16>}, {transform_indices = @transform_2, window_bounds = array<i64: 8, 16>}]} {
    %c0_i32 = arith.constant 0 : i32
    %0 = arith.cmpi eq, %arg2, %c0_i32 : i32
    %1 = arith.extui %0 : i1 to i32
    %c0_i32_0 = arith.constant 0 : i32
    %2 = arith.cmpi ne, %1, %c0_i32_0 : i32
    scf.if %2 {
      %cst_8 = arith.constant 0.000000e+00 : f32
      %9 = vector.broadcast %cst_8 : f32 to vector<8x16xf32>
      %c0_9 = arith.constant 0 : index
      %c0_10 = arith.constant 0 : index
      %10 = vector.load %arg5[%c0_9, %c0_10] : memref<8x16xf32, #tpu.memory_space<vmem>>, vector<8x16xf32>
      tpu.vector_store %arg5[%c0_9, %c0_10], %9 {strides = array<i32>} : memref<8x16xf32, #tpu.memory_space<vmem>>, vector<8x16xf32>,
    } else {
    }
    %c0 = arith.constant 0 : index
    %c0_1 = arith.constant 0 : index
    %3 = vector.load %arg5[%c0, %c0_1] : memref<8x16xf32, #tpu.memory_space<vmem>>, vector<8x16xf32>
    %c0_2 = arith.constant 0 : index
    %c0_3 = arith.constant 0 : index
    %4 = vector.load %arg3[%c0_2, %c0_3] : memref<8x32xf32, #tpu.memory_space<vmem>>, vector<8x32xf32>
    %c0_4 = arith.constant 0 : index
    %c0_5 = arith.constant 0 : index
    %5 = vector.load %arg4[%c0_4, %c0_5] : memref<32x16xf32, #tpu.memory_space<vmem>>, vector<32x16xf32>
    %cst = arith.constant dense<0.000000e+00> : vector<8x16xf32>
    %6 = tpu.matmul %4, %5, %cst {dimension_numbers = #tpu.dot_dimension_numbers<[1], [0], [0], [1], [0, 0, 1, 1], [], []>} : vector<8x32xf32>, vector<32x16xf32>, vector<8x16xf32> -> vector<8x16xf32>
    %7 = arith.addf %3, %6 : vector<8x16xf32>
    %c0_6 = arith.constant 0 : index
    %c0_7 = arith.constant 0 : index
    %8 = vector.load %arg5[%c0_6, %c0_7] : memref<8x16xf32, #tpu.memory_space<vmem>>, vector<8x16xf32>
    tpu.vector_store %arg5[%c0_6, %c0_7], %7 {strides = array<i32>} : memref<8x16xf32, #tpu.memory_space<vmem>>, vector<8x16xf32>,
    return
  }
  func.func @transform_0(%arg0: i32, %arg1: i32, %arg2: i32) -> (i32, i32) {
    %c0_i32 = arith.constant 0 : i32
    return %arg0, %arg2 : i32, i32
  }
  func.func @transform_1(%arg0: i32, %arg1: i32, %arg2: i32) -> (i32, i32) {
    %c0_i32 = arith.constant 0 : i32
    return %arg2, %arg1 : i32, i32
  }
  func.func @transform_2(%arg0: i32, %arg1: i32, %arg2: i32) -> (i32, i32) {
    %c0_i32 = arith.constant 0 : i32
    return %arg0, %arg1 : i32, i32
  }
}

</mosaic_0001>

<llo_original>
// kernel: matmul.1
$region0: #{matmul.1}
  #allocation0 [shape = 'u32[]', space=smem, size = 0x4, offset = 0x4, fixed_abs, tag = 'smem constant byte address 0x4 - core index']
  #allocation1 [shape = 'u32[144,128]{1,0:T(1,128)}', space=vmem, size = 0x12000, scoped, tag = 'internal scratch']
  %s0 = inlined_call_operand.vmem [shape: f32[8,32], index: 0, kind: input, shape index: {}]
  %s1 = inlined_call_operand.vmem [shape: f32[32,16], index: 1, kind: input, shape index: {}]
  %s2 = inlined_call_operand.hbm [shape: f32[8,16], index: 2, kind: output, shape index: {}]
  %s3 = sld [smem:[#allocation0]]
  $region22: #{matmul.1} parent=0
    _
  %s5 = ssub.s32 1, %s3
  %s6 = scalar_select 0, %s5, %s3
  $region1: #{matmul.1} parent=0
    #allocation2 [shape = 'u8[4096]{0}', space=vmem, size = 0x1000, scoped, tag = 'output window, operand 0, single buffered']
    #allocation3 [shape = 's32[1]{0}', space=sflag, size = 0x4, scoped, tag = 'scoped memory for matmul.1']
    %7 = vsyncpa [#allocation3], 0
    // Predicated region
    $region2: #{matmul.1} parent=1 // pred_check
      _
    $region3: #{matmul.1} parent=1 // pred_check_branch
      %9 = sbr.rel (0) target = $region5
    $region4: #{matmul.1} parent=1 // pred_region
      _
    $region5: #{matmul.1} parent=1 // pred_fallthru
      _
    // Predicated region
    $region6: #{matmul.1} parent=1 // pred_check
      _
    $region7: #{matmul.1} parent=1 // pred_check_branch
      %11 = sbr.rel (0) target = $region9
    $region8: #{matmul.1} parent=1 // pred_region
      _
    $region9: #{matmul.1} parent=1 // pred_fallthru
      _
    %p12 = scmp.eq.s32.totalorder 0, 0
    // Predicated region
    $region10: #{matmul.1} parent=1 // pred_check
      %p13 = pneg %p12
    $region11: #{matmul.1} parent=1 // pred_check_branch
      %15 = sbr.rel (%p13) target = $region13
    $region12: #{matmul.1} parent=1 // pred_region
      %vm16 = vcmask 130048
      %17 = vst.msk [vmem:[#allocation2] sm:$0xff] %vm16, 0.0
    $region13: #{matmul.1} parent=1 // pred_fallthru
      _
    %v18 = vld [vmem:[#allocation2] sm:$0xff]
    %v19 = vld [vmem:[%s0] sm:$0xff]
    %v20 = vld [vmem:[%s1] sm:$0xff]
    %v21 = vld [vmem:[%s1 + $0x8] sm:$0xff]
    %v22 = vld [vmem:[%s1 + $0x10] sm:$0xff]
    %v23 = vld [vmem:[%s1 + $0x18] sm:$0xff]
    %vm24 = vcmask 261120
    %v26 = vsel %vm24, %v19, 0
    %28 = vmatprep.subr.mxu0 0.0
    %29 = vmatpush1.msra.mxu0 %v20
    %30 = vmatprep.subr.mxu0 0.0
    %31 = vmatpush1.msra.mxu0 %v21
    %32 = vmatprep.subr.mxu0 0.0
    %33 = vmatpush1.msra.mxu0 %v22
    %34 = vmatprep.subr.mxu0 0.0
    %35 = vmatpush1.msra.mxu0 %v23
    %36 = vmatprep.subr.mxu0 0.0
    %37 = vmatpush1.msra.mxu0 0.0
    %38 = vmatprep.subr.mxu0 0.0
    %39 = vmatpush1.msra.mxu0 0.0
    %40 = vmatprep.subr.mxu0 0.0
    %41 = vmatpush1.msra.mxu0 0.0
    %42 = vmatprep.subr.mxu0 0.0
    %43 = vmatpush1.msra.mxu0 0.0
    %44 = vmatprep.subr.mxu0 0.0
    %45 = vmatpush1.msra.mxu0 0.0
    %46 = vmatprep.subr.mxu0 0.0
    %47 = vmatpush1.msra.mxu0 0.0
    %48 = vmatprep.subr.mxu0 0.0
    %49 = vmatpush1.msra.mxu0 0.0
    %50 = vmatprep.subr.mxu0 0.0
    %51 = vmatpush1.msra.mxu0 0.0
    %52 = vmatprep.subr.mxu0 0.0
    %53 = vmatpush1.msra.mxu0 0.0
    %54 = vmatprep.subr.mxu0 0.0
    %55 = vmatpush1.msra.mxu0 0.0
    %56 = vmatprep.subr.mxu0 0.0
    %57 = vmatpush1.msra.mxu0 0.0
    %58 = vmatprep.subr.mxu0 0.0
    %59 = vmatpush1.msra.mxu0 0.0
    %60 = vmatprep.subr.mxu0 0.0
    %61 = vmatpush1.msra.mxu0 0.0
    %62 = vmatprep.subr.mxu0 0.0
    %63 = vmatpush1.msra.mxu0 0.0
    %64 = vmatprep.subr.mxu0 0.0
    %65 = vmatpush1.msra.mxu0 0.0
    %66 = vmatprep.subr.mxu0 0.0
    %67 = vmatpush1.msra.mxu0 0.0
    %68 = vmatprep.subr.mxu0 0.0
    %69 = vmatpush1.msra.mxu0 0.0
    %70 = vmatprep.subr.mxu0 0.0
    %71 = vmatpush1.msra.mxu0 0.0
    %72 = vmatprep.subr.mxu0 0.0
    %73 = vmatpush1.msra.mxu0 0.0
    %74 = vmatprep.subr.mxu0 0.0
    %75 = vmatpush1.msra.mxu0 0.0
    %76 = vmatprep.subr.mxu0 0.0
    %77 = vmatpush1.msra.mxu0 0.0
    %78 = vmatprep.subr.mxu0 0.0
    %79 = vmatpush1.msra.mxu0 0.0
    %80 = vmatprep.subr.mxu0 0.0
    %81 = vmatpush1.msra.mxu0 0.0
    %82 = vmatprep.subr.mxu0 0.0
    %83 = vmatpush1.msra.mxu0 0.0
    %84 = vmatprep.subr.mxu0 0.0
    %85 = vmatpush1.msra.mxu0 0.0
    %86 = vmatprep.subr.mxu0 0.0
    %87 = vmatpush1.msra.mxu0 0.0
    %88 = vmatprep.subr.mxu0 0.0
    %89 = vmatpush1.msra.mxu0 0.0
    %90 = vmatprep.subr.mxu0 0.0
    %91 = vmatpush1.msra.mxu0 0.0
    %92 = vmatprep.mubr.f32.mxu0 0.0
    %93 = vmatmul.mubr.f32.gmra.mrb[0].mxu0 %v26
    %v94 = vpop.f32.mrb[0].mxu0
    %v95 = vadd.f32 0.0, %v94
    %v96 = vpop.f32.mrb[0].mxu0
    %97 = vdwg.mxu0
    %v98 = vadd.f32 %v18, %v95
    %vm99 = vcmask 130048
    %100 = vst.msk [vmem:[#allocation2] sm:$0xff] %vm99, %v98
    // Predicated region
    $region14: #{matmul.1} parent=1 // pred_check
      _
    $region15: #{matmul.1} parent=1 // pred_check_branch
      %102 = sbr.rel (0) target = $region17
    $region16: #{matmul.1} parent=1 // pred_region
      %s104 = ssub.s32 128, 128
      %105 = vsyncadd [#allocation3], %s104
      %s107 = sshll.u32 [#allocation2], 4
      %s108 = int_to_ptr.vmem [resolvable:$true] %s107
      %110 = dma.vmem_to_hbm [thread:$0]  %s108, 128, %s2, [#allocation3]
    $region17: #{matmul.1} parent=1 // pred_fallthru
      _
    // Predicated region
    $region18: #{matmul.1} parent=1 // pred_check
      _
    $region19: #{matmul.1} parent=1 // pred_check_branch
      %112 = sbr.rel (0) target = $region21
    $region20: #{matmul.1} parent=1 // pred_region
      %113 = dma.done [#allocation3], 128
    $region21: #{matmul.1} parent=1 // pred_fallthru
      _
    %114 = vsyncpa [#allocation3], 1

</llo_original>
